<compile_context>
chip_gen: v7x
topology: tpu7x:2x2x1
jax: 0.10.0
libtpu: 0.0.40
codegen_flags: <defaults>
</compile_context>

<pallas_src>
import functools

import jax
import jax.numpy as jnp
from jax import lax
from jax.experimental import pallas as pl
from jax.experimental.pallas import tpu as pltpu


def _round_up(x, m):
    return -(-x // m) * m


def _conv_bn_relu_kernel(p_ref, w_ref, s_ref, b_ref, o_ref, *scratch,
                         apply_relu, tk, tile_n, weights_resident):
    # p_ref: (tile_m, tk)         bf16 im2col rows (K = Cin*KH*KW, lane-dense)
    # w_ref: (tk, tile_n) bf16 weight panel, or the full resident
    #        (K_pad, Cout_pad) slab when weights_resident
    # s_ref: (1, tile_n)          f32 folded BN scale (gamma / sqrt(var+eps))
    # b_ref: (1, tile_n)          f32 folded BN bias  (beta - mean*scale)
    # o_ref: (tile_m, tile_n)     bf16 output tile
    # scratch: () for a single-K-chunk launch, or (acc_ref,) f32 accumulator
    j = pl.program_id(1)
    k = pl.program_id(2)

    if weights_resident:
        # Whole weight slab is held resident in VMEM; slice this step's
        # (tk, tile_n) panel.  Offsets are multiples of 128 -> aligned slices.
        w = w_ref[pl.ds(pl.multiple_of(k * tk, 128), tk),
                  pl.ds(pl.multiple_of(j * tile_n, 128), tile_n)]
    else:
        w = w_ref[...]

    # bf16 x bf16 -> f32 accumulation on the MXU.
    part = jnp.dot(p_ref[...], w, preferred_element_type=jnp.float32)

    def _epilogue(acc):
        y = acc * s_ref[...] + b_ref[...]              # folded BN, f32 VPU
        if apply_relu:
            y = jnp.maximum(y, 0.0)
        o_ref[...] = y.astype(o_ref.dtype)             # bf16, lane-dense store

    if not scratch:                                    # K contracted in 1 step
        _epilogue(part)
    else:
        acc_ref, = scratch

        @pl.when(k == 0)
        def _():
            acc_ref[...] = jnp.zeros_like(acc_ref)

        acc_ref[...] += part

        @pl.when(k == pl.num_programs(2) - 1)
        def _():
            _epilogue(acc_ref[...])


def _im2col_nhwc(x_nhwc, kh, kw, stride, padding, dilation, dtype):
    """Materialized im2col rows: (N*Ho*Wo, KH*KW*Cin), tap-major / Cin-minor."""
    # TODO(synk): implicit im2col (manual DMA of receptive-field row panels).
    xp = jnp.pad(x_nhwc, ((0, 0), (padding, padding), (padding, padding), (0, 0)))
    n, hp, wp, c = xp.shape
    eff_kh = dilation * (kh - 1) + 1
    eff_kw = dilation * (kw - 1) + 1
    ho = (hp - eff_kh) // stride + 1
    wo = (wp - eff_kw) // stride + 1
    xp = xp.astype(dtype)                              # bf16 halves HBM traffic
    taps = []
    for i in range(kh):
        for j in range(kw):
            taps.append(xp[:,
                           i * dilation: i * dilation + stride * ho: stride,
                           j * dilation: j * dilation + stride * wo: stride,
                           :])
    patches = jnp.stack(taps, axis=3)                  # (N, Ho, Wo, T, Cin)
    return patches.reshape(n * ho * wo, kh * kw * c), ho, wo


def _plan_tiles(m, cout, k_dim, out_itemsize):
    """Pick (tile_m, m_pad, tile_n, cout_pad, tk, k_pad, weights_resident)."""
    # K: flatten the taps into the contraction. One lane-dense step when it
    # fits; otherwise 512-wide K chunks with an accumulator.
    if k_dim <= 1024:
        tk = _round_up(k_dim, 128)
    else:
        tk = 512
    k_pad = _round_up(k_dim, tk)

    # Cout: 256 fills the 2x256x256 MXU on v6e/v7x; clamp for small layers
    # (v5e's native 128x128 MXU stays fully fed at 128).
    tile_n = min(256, _round_up(cout, 128))
    cout_pad = _round_up(cout, tile_n)

    # M: big 16-aligned tiles (bf16 sublane packing) amortize the ~0.35us
    # per-grid-step overhead; ensure >= 2 M tiles when possible so v7x's two
    # TensorCores can split the 'parallel' axis.
    m16 = _round_up(m, 16)
    tile_m = min(512, m16)
    if m16 >= 256 and _round_up(m16, tile_m) == tile_m:
        tile_m = _round_up(-(-m16 // 2), 16)

    # Hold the whole weight slab resident in VMEM when it is small.
    weights_resident = k_pad * cout_pad * 2 <= 4 * 1024 * 1024

    # Keep the per-step VMEM footprint under the 32 MiB scoped default
    # (v7x only has 64 MiB physical VMEM, so never rely on more).
    def _vmem_est(tm):
        w_bytes = (2 * k_pad * cout_pad * 2 if weights_resident
                   else 2 * tk * tile_n * 2)
        return (2 * tm * tk * 2                        # patch block (bf16, x2)
                + w_bytes                              # weights
                + 2 * tm * tile_n * out_itemsize       # output block (x2)
                + tm * tile_n * 4                      # f32 accumulator
                + 2 * 2 * tile_n * 4)                  # BN scale / bias
    budget = 24 * 1024 * 1024
    while _vmem_est(tile_m) > budget and tile_m > 256:
        tile_m = max(256, _round_up(tile_m // 2, 16))
    if _vmem_est(tile_m) > budget:
        weights_resident = False

    m_pad = _round_up(m16, tile_m)
    return tile_m, m_pad, tile_n, cout_pad, tk, k_pad, weights_resident


def basic_conv_forward(x_nchw, conv_w, bn_gamma, bn_beta, bn_mean, bn_var,
                       *, stride=1, padding=0, dilation=1, relu=True, bn=True,
                       eps=1e-5, out_dtype=jnp.bfloat16):
    """BasicConv.forward (inference). x: (N, Cin, H, W); w: (Cout, Cin, KH, KW)."""
    cout, cin, kh, kw = conv_w.shape
    n = x_nchw.shape[0]
    k_dim = cin * kh * kw

    # ---- layout glue (plain JAX): NCHW -> NHWC, flattened im2col rows ----
    x_nhwc = jnp.transpose(x_nchw, (0, 2, 3, 1))
    patches, ho, wo = _im2col_nhwc(x_nhwc, kh, kw, stride, padding, dilation,
                                   jnp.bfloat16)
    m = n * ho * wo

    # weights (Cout, Cin, KH, KW) -> (KH*KW*Cin, Cout); matches the patch K order.
    w2d = jnp.transpose(conv_w, (2, 3, 1, 0)).reshape(k_dim, cout)

    # folded BN scale / bias (inference semantics), f32
    if bn:
        scale = bn_gamma / jnp.sqrt(bn_var + eps)
        bias = bn_beta - bn_mean * scale
    else:
        scale = jnp.ones((cout,), jnp.float32)
        bias = jnp.zeros((cout,), jnp.float32)

    out_itemsize = jnp.dtype(out_dtype).itemsize
    (tile_m, m_pad, tile_n, cout_pad, tk, k_pad,
     weights_resident) = _plan_tiles(m, cout, k_dim, out_itemsize)
    single_k = (k_pad == tk)

    # ---- zero-pad to the tile grid (padded rows/cols sliced off below) ----
    patches = jnp.pad(patches, ((0, m_pad - m), (0, k_pad - k_dim)))
    w2d = jnp.pad(w2d, ((0, k_pad - k_dim),
                        (0, cout_pad - cout))).astype(jnp.bfloat16)
    scale2d = jnp.pad(scale, (0, cout_pad - cout)
                      ).reshape(1, cout_pad).astype(jnp.float32)
    bias2d = jnp.pad(bias, (0, cout_pad - cout)
                     ).reshape(1, cout_pad).astype(jnp.float32)

    grid = (m_pad // tile_m, cout_pad // tile_n, k_pad // tk)   # M, Cout, K

    if weights_resident:
        # Full weight slab, constant block index -> resident in VMEM.
        w_spec = pl.BlockSpec((k_pad, cout_pad), lambda i, j, k: (0, 0))
    else:
        # TODO(synk): consider pipeline_mode=pl.Buffered(3) here once weight
        # DMAs become the small, frequent transfer for huge layers.
        w_spec = pl.BlockSpec((tk, tile_n), lambda i, j, k: (k, j))

    kernel = functools.partial(_conv_bn_relu_kernel, apply_relu=relu, tk=tk,
                               tile_n=tile_n, weights_resident=weights_resident)

    cost = pl.CostEstimate(
        flops=2 * m * cout * k_dim,
        transcendentals=0,
        bytes_accessed=(m_pad * k_pad * 2 + k_pad * cout_pad * 2
                        + m_pad * cout_pad * out_itemsize + 2 * cout_pad * 4))

    out2d = pl.pallas_call(
        kernel,
        out_shape=jax.ShapeDtypeStruct((m_pad, cout_pad), out_dtype),
        grid_spec=pltpu.PrefetchScalarGridSpec(
            num_scalar_prefetch=0,
            grid=grid,
            in_specs=[
                # im2col rows: index depends only on (i, k) -> stays resident
                # across the whole Cout (j) sweep when K is a single chunk.
                pl.BlockSpec((tile_m, tk), lambda i, j, k: (i, k)),
                w_spec,
                # BN scale / bias: constant across i and k -> held resident.
                pl.BlockSpec((1, tile_n), lambda i, j, k: (0, j)),
                pl.BlockSpec((1, tile_n), lambda i, j, k: (0, j)),
            ],
            out_specs=pl.BlockSpec((tile_m, tile_n), lambda i, j, k: (i, j)),
            scratch_shapes=([] if single_k
                            else [pltpu.VMEM((tile_m, tile_n), jnp.float32)]),
        ),
        compiler_params=pltpu.CompilerParams(
            dimension_semantics=("parallel", "parallel", "arbitrary")),
        cost_estimate=cost,
    )(patches, w2d, scale2d, bias2d)

    # Drop M / Cout padding (padded rows carry the BN bias — never remove this
    # slice), then back to NCHW.
    out2d = out2d[:m, :cout]
    out_nhwc = out2d.reshape(n, ho, wo, cout)
    return jnp.transpose(out_nhwc, (0, 3, 1, 2))


def _reference(x_nchw, conv_w, gamma, beta, mean, var, *, stride, padding,
               dilation, relu, eps=1e-5):
    # Reference with bf16-rounded conv operands (matching the kernel's MXU
    # inputs) and f32 accumulation / BN / ReLU.
    xb = x_nchw.astype(jnp.bfloat16).astype(jnp.float32)
    wb = conv_w.astype(jnp.bfloat16).astype(jnp.float32)
    y = lax.conv_general_dilated(
        xb, wb,
        window_strides=(stride, stride),
        padding=[(padding, padding), (padding, padding)],
        rhs_dilation=(dilation, dilation),
        dimension_numbers=("NCHW", "OIHW", "NCHW"))
    s = (gamma / jnp.sqrt(var + eps)).reshape(1, -1, 1, 1)
    b = (beta - mean * gamma / jnp.sqrt(var + eps)).reshape(1, -1, 1, 1)
    y = y * s + b
    if relu:
        y = jnp.maximum(y, 0.0)
    return y


if __name__ == "__main__":
    # BasicConv(in_planes=4, out_planes=8, kernel_size=3, stride=1, padding=1)
    N, CIN, H, W = 2, 4, 16, 16
    COUT, KH, KW = 8, 3, 3
    STRIDE, PAD, DIL = 1, 1, 1

    key = jax.random.PRNGKey(0)
    kx, kw_, kg, kb, km, kv = jax.random.split(key, 6)

    x = jax.random.normal(kx, (N, CIN, H, W), jnp.float32)
    conv_w = jax.random.normal(kw_, (COUT, CIN, KH, KW), jnp.float32) * 0.1
    bn_gamma = 1.0 + 0.1 * jax.random.normal(kg, (COUT,), jnp.float32)
    bn_beta = 0.1 * jax.random.normal(kb, (COUT,), jnp.float32)
    bn_mean = 0.05 * jax.random.normal(km, (COUT,), jnp.float32)
    bn_var = 1.0 + 0.1 * jax.random.uniform(kv, (COUT,), jnp.float32)

    out = basic_conv_forward(x, conv_w, bn_gamma, bn_beta, bn_mean, bn_var,
                             stride=STRIDE, padding=PAD, dilation=DIL,
                             relu=True, bn=True)
    out = jax.block_until_ready(out)
    assert out.shape == (N, COUT, H, W), out.shape

    ref = _reference(x, conv_w, bn_gamma, bn_beta, bn_mean, bn_var,
                     stride=STRIDE, padding=PAD, dilation=DIL, relu=True)
    out_f32 = out.astype(jnp.float32)
    # bf16 MXU operands + bf16 output store -> tolerance loosened vs. f32.
    assert jnp.allclose(out_f32, ref, atol=2e-2, rtol=2e-2), \
        float(jnp.max(jnp.abs(out_f32 - ref)))

    print("KERNEL_OK")
</pallas_src>

<mosaic_0001>
module attributes {stable_mosaic.version = 11 : i64} {
  func.func @_conv_bn_relu_kernel(%arg0: i32, %arg1: i32, %arg2: i32, %arg3: memref<256x128xbf16, #tpu.memory_space<vmem>>, %arg4: memref<128x128xbf16, #tpu.memory_space<vmem>>, %arg5: memref<1x128xf32, #tpu.memory_space<vmem>>, %arg6: memref<1x128xf32, #tpu.memory_space<vmem>>, %arg7: memref<256x128xbf16, #tpu.memory_space<vmem>>) attributes {dimension_semantics = [#tpu.dimension_semantics<parallel>, #tpu.dimension_semantics<parallel>, #tpu.dimension_semantics<arbitrary>], iteration_bounds = array<i64: 2, 1, 1>, scalar_prefetch = 0 : i64, scratch_operands = 0 : i64, tpu.core_type = #tpu.core_type<tc>, window_params = [{transform_indices = @transform_0, window_bounds = array<i64: 256, 128>}, {pipeline_mode = #tpu.pipeline_mode<synchronous>, transform_indices = @transform_1, window_bounds = array<i64: 128, 128>}, {transform_indices = @transform_2, window_bounds = array<i64: 1, 128>}, {transform_indices = @transform_3, window_bounds = array<i64: 1, 128>}, {transform_indices = @transform_4, window_bounds = array<i64: 256, 128>}]} {
    %c128_i32 = arith.constant 128 : i32
    %0 = arith.muli %arg2, %c128_i32 : i32
    %1 = tpu.assume_multiple %0, 128 : i32
    %c128_i32_0 = arith.constant 128 : i32
    %2 = arith.muli %arg1, %c128_i32_0 : i32
    %3 = tpu.assume_multiple %2, 128 : i32
    %4 = arith.index_cast %1 : i32 to index
    %5 = arith.index_cast %3 : i32 to index
    %6 = vector.load %arg4[%4, %5] : memref<128x128xbf16, #tpu.memory_space<vmem>>, vector<128x128xbf16>
    %c0 = arith.constant 0 : index
    %c0_1 = arith.constant 0 : index
    %7 = vector.load %arg3[%c0, %c0_1] : memref<256x128xbf16, #tpu.memory_space<vmem>>, vector<256x128xbf16>
    %cst = arith.constant dense<0.000000e+00> : vector<256x128xf32>
    %8 = tpu.matmul %7, %6, %cst {dimension_numbers = #tpu.dot_dimension_numbers<[1], [0], [0], [1], [0, 0, 1, 1], [], []>} : vector<256x128xbf16>, vector<128x128xbf16>, vector<256x128xf32> -> vector<256x128xf32>
    %c0_2 = arith.constant 0 : index
    %c0_3 = arith.constant 0 : index
    %9 = vector.load %arg5[%c0_2, %c0_3] : memref<1x128xf32, #tpu.memory_space<vmem>>, vector<1x128xf32>
    %10 = vector.broadcast %9 : vector<1x128xf32> to vector<256x128xf32>
    %11 = arith.mulf %8, %10 : vector<256x128xf32>
    %c0_4 = arith.constant 0 : index
    %c0_5 = arith.constant 0 : index
    %12 = vector.load %arg6[%c0_4, %c0_5] : memref<1x128xf32, #tpu.memory_space<vmem>>, vector<1x128xf32>
    %13 = vector.broadcast %12 : vector<1x128xf32> to vector<256x128xf32>
    %14 = arith.addf %11, %13 : vector<256x128xf32>
    %cst_6 = arith.constant 0.000000e+00 : f32
    %15 = vector.broadcast %cst_6 : f32 to vector<256x128xf32>
    %16 = arith.maximumf %14, %15 : vector<256x128xf32>
    %17 = arith.truncf %16 : vector<256x128xf32> to vector<256x128xbf16>
    %c0_7 = arith.constant 0 : index
    %c0_8 = arith.constant 0 : index
    %18 = vector.load %arg7[%c0_7, %c0_8] : memref<256x128xbf16, #tpu.memory_space<vmem>>, vector<256x128xbf16>
    tpu.vector_store %arg7[%c0_7, %c0_8], %17 {strides = array<i32>} : memref<256x128xbf16, #tpu.memory_space<vmem>>, vector<256x128xbf16>,
    return
  }
  func.func @transform_0(%arg0: i32, %arg1: i32, %arg2: i32) -> (i32, i32) {
    %c0_i32 = arith.constant 0 : i32
    return %arg0, %arg2 : i32, i32
  }
  func.func @transform_1(%arg0: i32, %arg1: i32, %arg2: i32) -> (i32, i32) {
    %c0_i32 = arith.constant 0 : i32
    %c0_i32_0 = arith.constant 0 : i32
    %c0_i32_1 = arith.constant 0 : i32
    return %c0_i32, %c0_i32_0 : i32, i32
  }
  func.func @transform_2(%arg0: i32, %arg1: i32, %arg2: i32) -> (i32, i32) {
    %c0_i32 = arith.constant 0 : i32
    %c0_i32_0 = arith.constant 0 : i32
    return %c0_i32, %arg1 : i32, i32
  }
  func.func @transform_3(%arg0: i32, %arg1: i32, %arg2: i32) -> (i32, i32) {
    %c0_i32 = arith.constant 0 : i32
    %c0_i32_0 = arith.constant 0 : i32
    return %c0_i32, %arg1 : i32, i32
  }
  func.func @transform_4(%arg0: i32, %arg1: i32, %arg2: i32) -> (i32, i32) {
    %c0_i32 = arith.constant 0 : i32
    return %arg0, %arg1 : i32, i32
  }
}

</mosaic_0001>

<llo_original>
// kernel: tpu_custom_call.1
$region0: #{tpu_custom_call.1}
  #allocation0 [shape = 'u32[]', space=smem, size = 0x4, offset = 0x4, fixed_abs, tag = 'smem constant byte address 0x4 - core index']
  #allocation1 [shape = 'u32[144,128]{1,0:T(1,128)}', space=vmem, size = 0x12000, scoped, tag = 'internal scratch']
  %s0 = inlined_call_operand.hbm [shape: bf16[512,128], index: 0, kind: input, shape index: {}]
  %s1 = inlined_call_operand.hbm [shape: bf16[128,128], index: 1, kind: input, shape index: {}]
  %s2 = inlined_call_operand.vmem [shape: f32[1,128], index: 2, kind: input, shape index: {}]
  %s3 = inlined_call_operand.vmem [shape: f32[1,128], index: 3, kind: input, shape index: {}]
  %s4 = inlined_call_operand.hbm [shape: bf16[512,128], index: 4, kind: output, shape index: {}]
  %s5 = sld [smem:[#allocation0]]
  $region57: #{tpu_custom_call.1} parent=0
    _
  %s7 = ssub.s32 1, %s5
  %s8 = scalar_select 0, %s7, %s5
  $region1: #{tpu_custom_call.1} parent=0
    #allocation2 [shape = 'u8[131072]{0}', space=vmem, size = 0x20000, scoped, tag = 'input window, operand 0']
    #allocation3 [shape = 's32[2]{0}', space=sflag, size = 0x8, scoped, tag = 'scoped memory for tpu_custom_call.1']
    #allocation4 [shape = 's32[2]{0}', space=sflag, size = 0x8, scoped, tag = 'scoped memory for tpu_custom_call.1']
    #allocation5 [shape = 'u8[32768]{0}', space=vmem, size = 0x8000, scoped, tag = 'input window, operand 1, single buffered']
    #allocation6 [shape = 's32[1]{0}', space=sflag, size = 0x4, scoped, tag = 'scoped memory for tpu_custom_call.1']
    #allocation7 [shape = 'u8[131072]{0}', space=vmem, size = 0x20000, scoped, tag = 'output window, operand 0']
    %9 = vsyncpa [#allocation3], 0
    %s10 = scalar_lea.sflag [#allocation3], 1
    %11 = vsyncpa %s10, 0
    %12 = vsyncpa [#allocation6], 0
    %13 = vsyncpa [#allocation4], 0
    %s14 = scalar_lea.sflag [#allocation4], 1
    %15 = vsyncpa %s14, 0
    loop: start=0, step=1, limit=4
    $region2: #{tpu_custom_call.1} parent=1 // loop_pre_header
      _
    $region3: #{tpu_custom_call.1} parent=1 // loop_header
      %s17 = sphi 0, %s21
      %p18 = scmp.ge.s32.totalorder %s17, 4
      %s24 = sphi 0, %s43
      %s25 = sphi 0, %s39
      %s26 = sphi 0, %s35
      %s27 = sphi 0, %s24
      %s28 = sphi 0, %s25
      %s29 = sphi 0, %s26
      %s30 = sphi 0, %s27
      %s31 = sphi 0, %s28
      %s32 = sphi 0, %s29
      %s48 = sphi 0, %s50
      %s51 = sphi 0, %s48
      %s52 = sphi 0, %s51
      %s68 = sphi 0, %s52
      %s72 = sphi 0, %s72
      %s74 = sphi 0, %s72
      %s75 = sphi 0, %s74
      %s89 = sphi 0, %s75
      %s95 = sphi 0, %s97
      %s98 = sphi 0, %s95
      %s99 = sphi 0, %s98
      %s115 = sphi 0, %s99
      %s121 = sphi 0, %s123
      %s124 = sphi 0, %s121
      %s125 = sphi 0, %s124
      %s141 = sphi 0, %s125
      %s149 = sphi 0, %s151
      %s152 = sphi 0, %s149
      %s153 = sphi 0, %s152
      %s169 = sphi 0, %s153
    $region4: #{tpu_custom_call.1} parent=1 // loop_header_branch
      %20 = sbr.rel (%p18) target = $region8
    $region5: #{tpu_custom_call.1} parent=1 // loop_body
      %s22 = ssub.s32 %s17, 1
      %s23 = ssub.s32 %s17, 2
      %s33 = sadd.s32 1, %s26
      %p34 = scmp.ge.s32.totalorder %s33, 1
      %s35 = scalar_select %p34, 0, %s33
      %s36 = sadd.s32 1, %s25
      %s37 = scalar_select %p34, %s36, %s25
      %p38 = scmp.ge.s32.totalorder %s37, 1
      %s39 = scalar_select %p38, 0, %s37
      %s40 = sadd.s32 1, %s24
      %s41 = scalar_select %p38, %s40, %s24
      %p42 = scmp.ge.s32.totalorder %s41, 2
      %s43 = scalar_select %p42, 0, %s41
      %s44 = ssub.s32 %s24, %s43
      %s45 = ssub.s32 %s26, %s35
      %s46 = sor.u32 %s44, %s45
      %p47 = scmp.eq.s32.totalorder %s46, 0
      %s49 = sadd.s32 %s48, 1
      %s50 = scalar_select %p47, %s48, %s49
      %p53 = pneg %p47
      %p54 = scmp.eq.s32.totalorder %s17, 1
      %p55 = por %p53, %p54
      %p56 = scmp.ne.s32.totalorder %s48, %s51
      %p57 = scmp.eq.s32.totalorder %s17, 0
      %p58 = por %p56, %p57
      %p59 = scmp.ne.s32.totalorder %s48, %s51
      %p60 = scmp.eq.s32.totalorder %s22, 1
      %p61 = por %p59, %p60
      %p62 = scmp.ne.s32.totalorder %s51, %s52
      %p63 = scmp.eq.s32.totalorder %s22, 0
      %p64 = por %p62, %p63
      %p65 = scmp.ne.s32.totalorder %s51, %s52
      %p66 = scmp.eq.s32.totalorder %s23, 1
      %p67 = por %p65, %p66
      %p69 = scmp.ne.s32.totalorder %s52, %s68
      %p70 = scmp.eq.s32.totalorder %s23, 0
      %p71 = por %p69, %p70
      %s73 = sadd.s32 %s72, 1
      %p76 = scmp.eq.s32.totalorder %s17, 1
      %p77 = scmp.ne.s32.totalorder %s72, %s74
      %p78 = scmp.eq.s32.totalorder %s17, 0
      %p79 = por %p77, %p78
      %p80 = scmp.ne.s32.totalorder %s72, %s74
      %p81 = scmp.eq.s32.totalorder %s22, 1
      %p82 = por %p80, %p81
      %p83 = scmp.ne.s32.totalorder %s74, %s75
      %p84 = scmp.eq.s32.totalorder %s22, 0
      %p85 = por %p83, %p84
      %p86 = scmp.ne.s32.totalorder %s74, %s75
      %p87 = scmp.eq.s32.totalorder %s23, 1
      %p88 = por %p86, %p87
      %p90 = scmp.ne.s32.totalorder %s75, %s89
      %p91 = scmp.eq.s32.totalorder %s23, 0
      %p92 = por %p90, %p91
      %s93 = ssub.s32 %s25, %s39
      %p94 = scmp.eq.s32.totalorder %s93, 0
      %s96 = sadd.s32 %s95, 1
      %s97 = scalar_select %p94, %s95, %s96
      %p100 = pneg %p94
      %p101 = scmp.eq.s32.totalorder %s17, 1
      %p102 = por %p100, %p101
      %p103 = scmp.ne.s32.totalorder %s95, %s98
      %p104 = scmp.eq.s32.totalorder %s17, 0
      %p105 = por %p103, %p104
      %p106 = scmp.ne.s32.totalorder %s95, %s98
      %p107 = scmp.eq.s32.totalorder %s22, 1
      %p108 = por %p106, %p107
      %p109 = scmp.ne.s32.totalorder %s98, %s99
      %p110 = scmp.eq.s32.totalorder %s22, 0
      %p111 = por %p109, %p110
      %p112 = scmp.ne.s32.totalorder %s98, %s99
      %p113 = scmp.eq.s32.totalorder %s23, 1
      %p114 = por %p112, %p113
      %p116 = scmp.ne.s32.totalorder %s99, %s115
      %p117 = scmp.eq.s32.totalorder %s23, 0
      %p118 = por %p116, %p117
      %s119 = ssub.s32 %s25, %s39
      %p120 = scmp.eq.s32.totalorder %s119, 0
      %s122 = sadd.s32 %s121, 1
      %s123 = scalar_select %p120, %s121, %s122
      %p126 = pneg %p120
      %p127 = scmp.eq.s32.totalorder %s17, 1
      %p128 = por %p126, %p127
      %p129 = scmp.ne.s32.totalorder %s121, %s124
      %p130 = scmp.eq.s32.totalorder %s17, 0
      %p131 = por %p129, %p130
      %p132 = scmp.ne.s32.totalorder %s121, %s124
      %p133 = scmp.eq.s32.totalorder %s22, 1
      %p134 = por %p132, %p133
      %p135 = scmp.ne.s32.totalorder %s124, %s125
      %p136 = scmp.eq.s32.totalorder %s22, 0
      %p137 = por %p135, %p136
      %p138 = scmp.ne.s32.totalorder %s124, %s125
      %p139 = scmp.eq.s32.totalorder %s23, 1
      %p140 = por %p138, %p139
      %p142 = scmp.ne.s32.totalorder %s125, %s141
      %p143 = scmp.eq.s32.totalorder %s23, 0
      %p144 = por %p142, %p143
      %s145 = ssub.s32 %s24, %s43
      %s146 = ssub.s32 %s25, %s39
      %s147 = sor.u32 %s145, %s146
      %p148 = scmp.eq.s32.totalorder %s147, 0
      %s150 = sadd.s32 %s149, 1
      %s151 = scalar_select %p148, %s149, %s150
      %p154 = pneg %p148
      %p155 = scmp.eq.s32.totalorder %s17, 1
      %p156 = por %p154, %p155
      %p157 = scmp.ne.s32.totalorder %s149, %s152
      %p158 = scmp.eq.s32.totalorder %s17, 0
      %p159 = por %p157, %p158
      %p160 = scmp.ne.s32.totalorder %s149, %s152
      %p161 = scmp.eq.s32.totalorder %s22, 1
      %p162 = por %p160, %p161
      %p163 = scmp.ne.s32.totalorder %s152, %s153
      %p164 = scmp.eq.s32.totalorder %s22, 0
      %p165 = por %p163, %p164
      %p166 = scmp.ne.s32.totalorder %s152, %s153
      %p167 = scmp.eq.s32.totalorder %s23, 1
      %p168 = por %p166, %p167
      %p170 = scmp.ne.s32.totalorder %s153, %s169
      %p171 = scmp.eq.s32.totalorder %s23, 0
      %p172 = por %p170, %p171
      %p173 = scmp.le.s32.totalorder 1, %s17
      %p174 = scmp.lt.s32.totalorder %s17, 3
      %p175 = pnand %p173, %p174
      %p176 = pneg %p175
      // Predicated region
      $region9: #{tpu_custom_call.1} parent=5 // pred_check
        _
      $region10: #{tpu_custom_call.1} parent=5 // pred_check_branch
        %178 = sbr.rel (%p175) target = $region12
      $region11: #{tpu_custom_call.1} parent=5 // pred_region
        %s179 = ssub.s32 %s17, 1
        // Predicated region
        $region13: #{tpu_custom_call.1} parent=11 // pred_check
          %p180 = pneg %p85
        $region14: #{tpu_custom_call.1} parent=11 // pred_check_branch
          %182 = sbr.rel (%p180) target = $region16
        $region15: #{tpu_custom_call.1} parent=11 // pred_region
          %s184 = ssub.s32 1024, 1024
          %185 = vsyncadd [#allocation6], %s184
          %s186 = sshll.u32 [#allocation5], 4
          %s187 = int_to_ptr.vmem [resolvable:$true] %s186
          %192 = dma.hbm_to_vmem [thread:$0]  %s1, 1024, %s187, [#allocation6], 64, 64, 4
        $region16: #{tpu_custom_call.1} parent=11 // pred_fallthru
          _
        // Predicated region
        $region17: #{tpu_custom_call.1} parent=11 // pred_check
          %p193 = pneg %p111
        $region18: #{tpu_custom_call.1} parent=11 // pred_check_branch
          %195 = sbr.rel (%p193) target = $region20
        $region19: #{tpu_custom_call.1} parent=11 // pred_region
          %p196 = scmp.lt.s32.totalorder %s28, 0
          %s197 = scalar_select %p196, %s28, 0
          %s198 = scalar_lea.vmem %s2, %s197
        $region20: #{tpu_custom_call.1} parent=11 // pred_fallthru
          _
        // Predicated region
        $region21: #{tpu_custom_call.1} parent=11 // pred_check
          %p199 = pneg %p137
        $region22: #{tpu_custom_call.1} parent=11 // pred_check_branch
          %201 = sbr.rel (%p199) target = $region24
        $region23: #{tpu_custom_call.1} parent=11 // pred_region
          %p202 = scmp.lt.s32.totalorder %s28, 0
          %s203 = scalar_select %p202, %s28, 0
          %s204 = scalar_lea.vmem %s3, %s203
        $region24: #{tpu_custom_call.1} parent=11 // pred_fallthru
          _
      $region12: #{tpu_custom_call.1} parent=5 // pred_fallthru
        _
      %p205 = scmp.lt.s32.totalorder %s17, 2
      // Predicated region
      $region25: #{tpu_custom_call.1} parent=5 // pred_check
        %p206 = pneg %p205
      $region26: #{tpu_custom_call.1} parent=5 // pred_check_branch
        %208 = sbr.rel (%p206) target = $region28
      $region27: #{tpu_custom_call.1} parent=5 // pred_region
        // Predicated region
        $region29: #{tpu_custom_call.1} parent=27 // pred_check
          %p209 = pneg %p58
        $region30: #{tpu_custom_call.1} parent=27 // pred_check_branch
          %211 = sbr.rel (%p209) target = $region32
        $region31: #{tpu_custom_call.1} parent=27 // pred_region
          %s212 = sand.u32 %s48, 1
          %s213 = scalar_lea.sflag [#allocation3], %s212
          %s214 = sand.u32 %s48, 1
          %s215 = smul.addr %s214, 128
          %s216 = scalar_lea.vmem [#allocation2], %s215
          %s217 = smul.u32 32, %s24
          %s219 = ssub.s32 2048, 2048
          %220 = vsyncadd %s213, %s219
          %s221 = sadd.s32 %s26, %s217
          %s222 = smul.addr %s221, 64
          %s223 = scalar_lea.hbm %s0, %s222
          %s224 = sshll.u32 %s216, 4
          %s225 = int_to_ptr.vmem [resolvable:$true] %s224
          %230 = dma.hbm_to_vmem [thread:$0]  %s223, 2048, %s225, %s213, 64, 64, 4
        $region32: #{tpu_custom_call.1} parent=27 // pred_fallthru
          _
      $region28: #{tpu_custom_call.1} parent=5 // pred_fallthru
        _
      %p231 = scmp.le.s32.totalorder 1, %s17
      %p232 = scmp.lt.s32.totalorder %s17, 3
      %p233 = pnand %p231, %p232
      %p234 = pneg %p233
      // Predicated region
      $region33: #{tpu_custom_call.1} parent=5 // pred_check
        _
      $region34: #{tpu_custom_call.1} parent=5 // pred_check_branch
        %236 = sbr.rel (%p233) target = $region36
      $region35: #{tpu_custom_call.1} parent=5 // pred_region
        %s237 = ssub.s32 %s17, 1
        %s238 = sand.u32 %s51, 1
        %s239 = scalar_lea.sflag [#allocation3], %s238
        %s240 = sand.u32 %s51, 1
        %s241 = smul.addr %s240, 128
        %s242 = scalar_lea.vmem [#allocation2], %s241
        // Predicated region
        $region37: #{tpu_custom_call.1} parent=35 // pred_check
          %p243 = pneg %p64
        $region38: #{tpu_custom_call.1} parent=35 // pred_check_branch
          %245 = sbr.rel (%p243) target = $region40
        $region39: #{tpu_custom_call.1} parent=35 // pred_region
          %246 = dma.done %s239, 2048
        $region40: #{tpu_custom_call.1} parent=35 // pred_fallthru
          _
        // Predicated region
        $region41: #{tpu_custom_call.1} parent=35 // pred_check
          %p247 = pneg %p85
        $region42: #{tpu_custom_call.1} parent=35 // pred_check_branch
          %249 = sbr.rel (%p247) target = $region44
        $region43: #{tpu_custom_call.1} parent=35 // pred_region
          %250 = dma.done [#allocation6], 1024
        $region44: #{tpu_custom_call.1} parent=35 // pred_fallthru
          _
        %s251 = sand.u32 %s51, 1
        %s252 = scalar_lea.sflag [#allocation3], %s251
        %s253 = sand.u32 %s51, 1
        %s254 = smul.addr %s253, 128
        %s255 = scalar_lea.vmem [#allocation2], %s254
        %p256 = pneg %p64
        %p257 = pneg %p61
        %p258 = pneg %p85
        %p259 = pneg %p82
        %p260 = scmp.lt.s32.totalorder %s28, 0
        %s261 = scalar_select %p260, %s28, 0
        %s262 = scalar_lea.vmem %s2, %s261
        %p263 = pneg %p111
        %p264 = pneg %p108
        %p265 = scmp.lt.s32.totalorder %s28, 0
        %s266 = scalar_select %p265, %s28, 0
        %s267 = scalar_lea.vmem %s3, %s266
        %p268 = pneg %p137
        %p269 = pneg %p134
        %p270 = pneg %p165
        %p271 = pneg %p162
        %s272 = sand.u32 %s152, 1
        %s273 = scalar_lea.sflag [#allocation4], %s272
        %s274 = sand.u32 %s152, 1
        %s275 = smul.addr %s274, 128
        %s276 = scalar_lea.vmem [#allocation7], %s275
        %s277 = smul.u32 32, %s27
        %p278 = scmp.lt.s32.totalorder %s28, 0
        %s279 = scalar_select %p278, %s28, 0
        %s280 = scalar_lea.vmem %s2, %s279
        %p281 = scmp.lt.s32.totalorder %s28, 0
        %s282 = scalar_select %p281, %s28, 0
        %s283 = scalar_lea.vmem %s3, %s282
        %s284 = smul.u32 32, %s27
        %s286 = smul.u32 %s29, 128
        %s287 = smul.u32 %s28, 128
        %s288 = sshra.s32 %s287, 7
        %s289 = sand.u32 %s287, 127
        %s290 = sshra.s32 %s286, 3
        %s291 = sand.u32 %s286, 7
        %s292 = sadd.s32 %s288, %s290
        %s293 = smul.addr %s292, 4
        %s294 = scalar_lea.vmem [#allocation5], %s293
        %v295 = vld [vmem:[%s294] sm:$0xf]
        %v296 = vld [vmem:[%s294 + $0x4] sm:$0xf]
        %v297 = vld [vmem:[%s294 + $0x8] sm:$0xf]
        %v298 = vld [vmem:[%s294 + $0xc] sm:$0xf]
        %v299 = vld [vmem:[%s294 + $0x10] sm:$0xf]
        %v300 = vld [vmem:[%s294 + $0x14] sm:$0xf]
        %v301 = vld [vmem:[%s294 + $0x18] sm:$0xf]
        %v302 = vld [vmem:[%s294 + $0x1c] sm:$0xf]
        %v303 = vld [vmem:[%s294 + $0x20] sm:$0xf]
        %v304 = vld [vmem:[%s294 + $0x24] sm:$0xf]
        %v305 = vld [vmem:[%s294 + $0x28] sm:$0xf]
        %v306 = vld [vmem:[%s294 + $0x2c] sm:$0xf]
        %v307 = vld [vmem:[%s294 + $0x30] sm:$0xf]
        %v308 = vld [vmem:[%s294 + $0x34] sm:$0xf]
        %v309 = vld [vmem:[%s294 + $0x38] sm:$0xf]
        %v310 = vld [vmem:[%s294 + $0x3c] sm:$0xf]
        %v311 = vld [vmem:[%s242] sm:$0xf]
        %v312 = vld [vmem:[%s242 + $0x4] sm:$0xf]
        %v313 = vld [vmem:[%s242 + $0x8] sm:$0xf]
        %v314 = vld [vmem:[%s242 + $0xc] sm:$0xf]
        %v315 = vld [vmem:[%s242 + $0x10] sm:$0xf]
        %v316 = vld [vmem:[%s242 + $0x14] sm:$0xf]
        %v317 = vld [vmem:[%s242 + $0x18] sm:$0xf]
        %v318 = vld [vmem:[%s242 + $0x1c] sm:$0xf]
        %v319 = vld [vmem:[%s242 + $0x20] sm:$0xf]
        %v320 = vld [vmem:[%s242 + $0x24] sm:$0xf]
        %v321 = vld [vmem:[%s242 + $0x28] sm:$0xf]
        %v322 = vld [vmem:[%s242 + $0x2c] sm:$0xf]
        %v323 = vld [vmem:[%s242 + $0x30] sm:$0xf]
        %v324 = vld [vmem:[%s242 + $0x34] sm:$0xf]
        %v325 = vld [vmem:[%s242 + $0x38] sm:$0xf]
        %v326 = vld [vmem:[%s242 + $0x3c] sm:$0xf]
        %v327 = vld [vmem:[%s242 + $0x40] sm:$0xf]
        %v328 = vld [vmem:[%s242 + $0x44] sm:$0xf]
        %v329 = vld [vmem:[%s242 + $0x48] sm:$0xf]
        %v330 = vld [vmem:[%s242 + $0x4c] sm:$0xf]
        %v331 = vld [vmem:[%s242 + $0x50] sm:$0xf]
        %v332 = vld [vmem:[%s242 + $0x54] sm:$0xf]
        %v333 = vld [vmem:[%s242 + $0x58] sm:$0xf]
        %v334 = vld [vmem:[%s242 + $0x5c] sm:$0xf]
        %v335 = vld [vmem:[%s242 + $0x60] sm:$0xf]
        %v336 = vld [vmem:[%s242 + $0x64] sm:$0xf]
        %v337 = vld [vmem:[%s242 + $0x68] sm:$0xf]
        %v338 = vld [vmem:[%s242 + $0x6c] sm:$0xf]
        %v339 = vld [vmem:[%s242 + $0x70] sm:$0xf]
        %v340 = vld [vmem:[%s242 + $0x74] sm:$0xf]
        %v341 = vld [vmem:[%s242 + $0x78] sm:$0xf]
        %v342 = vld [vmem:[%s242 + $0x7c] sm:$0xf]
        %v375 = vunpack.c.l.b16 %v311
        %v376 = vunpack.c.l.b16 %v312
        %v377 = vunpack.c.l.b16 %v313
        %v378 = vunpack.c.l.b16 %v314
        %v379 = vunpack.c.l.b16 %v315
        %v380 = vunpack.c.l.b16 %v316
        %v381 = vunpack.c.l.b16 %v317
        %v382 = vunpack.c.l.b16 %v318
        %v383 = vunpack.c.l.b16 %v319
        %v384 = vunpack.c.l.b16 %v320
        %v385 = vunpack.c.l.b16 %v321
        %v386 = vunpack.c.l.b16 %v322
        %v387 = vunpack.c.l.b16 %v323
        %v388 = vunpack.c.l.b16 %v324
        %v389 = vunpack.c.l.b16 %v325
        %v390 = vunpack.c.l.b16 %v326
        %v391 = vunpack.c.l.b16 %v327
        %v392 = vunpack.c.l.b16 %v328
        %v393 = vunpack.c.l.b16 %v329
        %v394 = vunpack.c.l.b16 %v330
        %v395 = vunpack.c.l.b16 %v331
        %v396 = vunpack.c.l.b16 %v332
        %v397 = vunpack.c.l.b16 %v333
        %v398 = vunpack.c.l.b16 %v334
        %v399 = vunpack.c.l.b16 %v335
        %v400 = vunpack.c.l.b16 %v336
        %v401 = vunpack.c.l.b16 %v337
        %v402 = vunpack.c.l.b16 %v338
        %v403 = vunpack.c.l.b16 %v339
        %v404 = vunpack.c.l.b16 %v340
        %v405 = vunpack.c.l.b16 %v341
        %v406 = vunpack.c.l.b16 %v342
        %v407 = vpack.c.b16 %v376, %v375
        %v408 = vpack.c.b16 %v378, %v377
        %v409 = vpack.c.b16 %v380, %v379
        %v410 = vpack.c.b16 %v382, %v381
        %v411 = vpack.c.b16 %v384, %v383
        %v412 = vpack.c.b16 %v386, %v385
        %v413 = vpack.c.b16 %v388, %v387
        %v414 = vpack.c.b16 %v390, %v389
        %v415 = vpack.c.b16 %v392, %v391
        %v416 = vpack.c.b16 %v394, %v393
        %v417 = vpack.c.b16 %v396, %v395
        %v418 = vpack.c.b16 %v398, %v397
        %v419 = vpack.c.b16 %v400, %v399
        %v420 = vpack.c.b16 %v402, %v401
        %v421 = vpack.c.b16 %v404, %v403
        %v422 = vpack.c.b16 %v406, %v405
        %v455 = vunpack.c.l.b16 %v295
        %v456 = vunpack.c.l.b16 %v296
        %v457 = vunpack.c.l.b16 %v297
        %v458 = vunpack.c.l.b16 %v298
        %v459 = vunpack.c.l.b16 %v299
        %v460 = vunpack.c.l.b16 %v300
        %v461 = vunpack.c.l.b16 %v301
        %v462 = vunpack.c.l.b16 %v302
        %v463 = vunpack.c.l.b16 %v303
        %v464 = vunpack.c.l.b16 %v304
        %v465 = vunpack.c.l.b16 %v305
        %v466 = vunpack.c.l.b16 %v306
        %v467 = vunpack.c.l.b16 %v307
        %v468 = vunpack.c.l.b16 %v308
        %v469 = vunpack.c.l.b16 %v309
        %v470 = vunpack.c.l.b16 %v310
        %v471 = vpack.c.b16 %v456, %v455
        %v472 = vpack.c.b16 %v458, %v457
        %v473 = vpack.c.b16 %v460, %v459
        %v474 = vpack.c.b16 %v462, %v461
        %v475 = vpack.c.b16 %v464, %v463
        %v476 = vpack.c.b16 %v466, %v465
        %v477 = vpack.c.b16 %v468, %v467
        %v478 = vpack.c.b16 %v470, %v469
        %487 = vmatprep.subr.bf16.mxu0 0
        %488 = vmatpush1.bf16.msra.mxu0 %v471
        %489 = vmatprep.subr.bf16.mxu0 0
        %490 = vmatpush1.bf16.msra.mxu0 %v472
        %491 = vmatprep.subr.bf16.mxu0 0
        %492 = vmatpush1.bf16.msra.mxu0 %v473
        %493 = vmatprep.subr.bf16.mxu0 0
        %494 = vmatpush1.bf16.msra.mxu0 %v474
        %495 = vmatprep.subr.bf16.mxu0 0
        %496 = vmatpush1.bf16.msra.mxu0 %v475
        %497 = vmatprep.subr.bf16.mxu0 0
        %498 = vmatpush1.bf16.msra.mxu0 %v476
        %499 = vmatprep.subr.bf16.mxu0 0
        %500 = vmatpush1.bf16.msra.mxu0 %v477
        %501 = vmatprep.subr.bf16.mxu0 0
        %502 = vmatpush1.bf16.msra.mxu0 %v478
        %503 = vmatprep.subr.bf16.mxu0 0
        %504 = vmatpush1.bf16.msra.mxu0 0
        %505 = vmatprep.subr.bf16.mxu0 0
        %506 = vmatpush1.bf16.msra.mxu0 0
        %507 = vmatprep.subr.bf16.mxu0 0
        %508 = vmatpush1.bf16.msra.mxu0 0
        %509 = vmatprep.subr.bf16.mxu0 0
        %510 = vmatpush1.bf16.msra.mxu0 0
        %511 = vmatprep.subr.bf16.mxu0 0
        %512 = vmatpush1.bf16.msra.mxu0 0
        %513 = vmatprep.subr.bf16.mxu0 0
        %514 = vmatpush1.bf16.msra.mxu0 0
        %515 = vmatprep.subr.bf16.mxu0 0
        %516 = vmatpush1.bf16.msra.mxu0 0
        %517 = vmatprep.subr.bf16.mxu0 0
        %518 = vmatpush1.bf16.msra.mxu0 0
        %519 = vmatprep.mubr.bf16.mxu0 0
        %520 = vmatmul.mubr.bf16.gmra.mrb[0].mxu0 %v407
        %v521 = vpop.f32.mrb[0].mxu0
        %v522 = vadd.f32 0.0, %v521
        %v523 = vpop.f32.mrb[0].mxu0
        %v524 = vpop.f32.mrb[0].mxu0
        %v525 = vadd.f32 0.0, %v524
        %v526 = vpop.f32.mrb[0].mxu0
        %527 = vmatprep.mubr.bf16.mxu0 0
        %528 = vmatmul.mubr.bf16.gmra.mrb[0].mxu0 %v408
        %v529 = vpop.f32.mrb[0].mxu0
        %v530 = vadd.f32 0.0, %v529
        %v531 = vpop.f32.mrb[0].mxu0
        %v532 = vpop.f32.mrb[0].mxu0
        %v533 = vadd.f32 0.0, %v532
        %v534 = vpop.f32.mrb[0].mxu0
        %535 = vmatprep.mubr.bf16.mxu0 0
        %536 = vmatmul.mubr.bf16.gmra.mrb[0].mxu0 %v409
        %v537 = vpop.f32.mrb[0].mxu0
        %v538 = vadd.f32 0.0, %v537
        %v539 = vpop.f32.mrb[0].mxu0
        %v540 = vpop.f32.mrb[0].mxu0
        %v541 = vadd.f32 0.0, %v540
        %v542 = vpop.f32.mrb[0].mxu0
        %543 = vmatprep.mubr.bf16.mxu0 0
        %544 = vmatmul.mubr.bf16.gmra.mrb[0].mxu0 %v410
        %v545 = vpop.f32.mrb[0].mxu0
        %v546 = vadd.f32 0.0, %v545
        %v547 = vpop.f32.mrb[0].mxu0
        %v548 = vpop.f32.mrb[0].mxu0
        %v549 = vadd.f32 0.0, %v548
        %v550 = vpop.f32.mrb[0].mxu0
        %551 = vmatprep.mubr.bf16.mxu0 0
        %552 = vmatmul.mubr.bf16.gmra.mrb[0].mxu0 %v411
        %v553 = vpop.f32.mrb[0].mxu0
        %v554 = vadd.f32 0.0, %v553
        %v555 = vpop.f32.mrb[0].mxu0
        %v556 = vpop.f32.mrb[0].mxu0
        %v557 = vadd.f32 0.0, %v556
        %v558 = vpop.f32.mrb[0].mxu0
        %559 = vmatprep.mubr.bf16.mxu0 0
        %560 = vmatmul.mubr.bf16.gmra.mrb[0].mxu0 %v412
        %v561 = vpop.f32.mrb[0].mxu0
        %v562 = vadd.f32 0.0, %v561
        %v563 = vpop.f32.mrb[0].mxu0
        %v564 = vpop.f32.mrb[0].mxu0
        %v565 = vadd.f32 0.0, %v564
        %v566 = vpop.f32.mrb[0].mxu0
        %567 = vmatprep.mubr.bf16.mxu0 0
        %568 = vmatmul.mubr.bf16.gmra.mrb[0].mxu0 %v413
        %v569 = vpop.f32.mrb[0].mxu0
        %v570 = vadd.f32 0.0, %v569
        %v571 = vpop.f32.mrb[0].mxu0
        %v572 = vpop.f32.mrb[0].mxu0
        %v573 = vadd.f32 0.0, %v572
        %v574 = vpop.f32.mrb[0].mxu0
        %575 = vmatprep.mubr.bf16.mxu0 0
        %576 = vmatmul.mubr.bf16.gmra.mrb[0].mxu0 %v414
        %v577 = vpop.f32.mrb[0].mxu0
        %v578 = vadd.f32 0.0, %v577
        %v579 = vpop.f32.mrb[0].mxu0
        %v580 = vpop.f32.mrb[0].mxu0
        %v581 = vadd.f32 0.0, %v580
        %v582 = vpop.f32.mrb[0].mxu0
        %583 = vmatprep.mubr.bf16.mxu0 0
        %584 = vmatmul.mubr.bf16.gmra.mrb[0].mxu0 %v415
        %v585 = vpop.f32.mrb[0].mxu0
        %v586 = vadd.f32 0.0, %v585
        %v587 = vpop.f32.mrb[0].mxu0
        %v588 = vpop.f32.mrb[0].mxu0
        %v589 = vadd.f32 0.0, %v588
        %v590 = vpop.f32.mrb[0].mxu0
        %591 = vmatprep.mubr.bf16.mxu0 0
        %592 = vmatmul.mubr.bf16.gmra.mrb[0].mxu0 %v416
        %v593 = vpop.f32.mrb[0].mxu0
        %v594 = vadd.f32 0.0, %v593
        %v595 = vpop.f32.mrb[0].mxu0
        %v596 = vpop.f32.mrb[0].mxu0
        %v597 = vadd.f32 0.0, %v596
        %v598 = vpop.f32.mrb[0].mxu0
        %599 = vmatprep.mubr.bf16.mxu0 0
        %600 = vmatmul.mubr.bf16.gmra.mrb[0].mxu0 %v417
        %v601 = vpop.f32.mrb[0].mxu0
        %v602 = vadd.f32 0.0, %v601
        %v603 = vpop.f32.mrb[0].mxu0
        %v604 = vpop.f32.mrb[0].mxu0
        %v605 = vadd.f32 0.0, %v604
        %v606 = vpop.f32.mrb[0].mxu0
        %607 = vmatprep.mubr.bf16.mxu0 0
        %608 = vmatmul.mubr.bf16.gmra.mrb[0].mxu0 %v418
        %v609 = vpop.f32.mrb[0].mxu0
        %v610 = vadd.f32 0.0, %v609
        %v611 = vpop.f32.mrb[0].mxu0
        %v612 = vpop.f32.mrb[0].mxu0
        %v613 = vadd.f32 0.0, %v612
        %v614 = vpop.f32.mrb[0].mxu0
        %615 = vmatprep.mubr.bf16.mxu0 0
        %616 = vmatmul.mubr.bf16.gmra.mrb[0].mxu0 %v419
        %v617 = vpop.f32.mrb[0].mxu0
        %v618 = vadd.f32 0.0, %v617
        %v619 = vpop.f32.mrb[0].mxu0
        %v620 = vpop.f32.mrb[0].mxu0
        %v621 = vadd.f32 0.0, %v620
        %v622 = vpop.f32.mrb[0].mxu0
        %623 = vmatprep.mubr.bf16.mxu0 0
        %624 = vmatmul.mubr.bf16.gmra.mrb[0].mxu0 %v420
        %v625 = vpop.f32.mrb[0].mxu0
        %v626 = vadd.f32 0.0, %v625
        %v627 = vpop.f32.mrb[0].mxu0
        %v628 = vpop.f32.mrb[0].mxu0
        %v629 = vadd.f32 0.0, %v628
        %v630 = vpop.f32.mrb[0].mxu0
        %631 = vmatprep.mubr.bf16.mxu0 0
        %632 = vmatmul.mubr.bf16.gmra.mrb[0].mxu0 %v421
        %v633 = vpop.f32.mrb[0].mxu0
        %v634 = vadd.f32 0.0, %v633
        %v635 = vpop.f32.mrb[0].mxu0
        %v636 = vpop.f32.mrb[0].mxu0
        %v637 = vadd.f32 0.0, %v636
        %v638 = vpop.f32.mrb[0].mxu0
        %639 = vmatprep.mubr.bf16.mxu0 0
        %640 = vmatmul.mubr.bf16.gmra.mrb[0].mxu0 %v422
        %v641 = vpop.f32.mrb[0].mxu0
        %v642 = vadd.f32 0.0, %v641
        %v643 = vpop.f32.mrb[0].mxu0
        %v644 = vpop.f32.mrb[0].mxu0
        %v645 = vadd.f32 0.0, %v644
        %v646 = vpop.f32.mrb[0].mxu0
        %647 = vdwg.mxu0
        %v648 = vld [vmem:[%s280] sm:$0x1]
        %v650 = vlaneseq
        %v651 = vshrl.u32 %v650, 7
        %v652 = vsub.s32 0, %v651
        %v653 = vrot.slane %v648, %v652
        %v655 = vmul.f32 %v522, %v653
        %v656 = vmul.f32 %v525, %v653
        %v657 = vmul.f32 %v530, %v653
        %v658 = vmul.f32 %v533, %v653
        %v659 = vmul.f32 %v538, %v653
        %v660 = vmul.f32 %v541, %v653
        %v661 = vmul.f32 %v546, %v653
        %v662 = vmul.f32 %v549, %v653
        %v663 = vmul.f32 %v554, %v653
        %v664 = vmul.f32 %v557, %v653
        %v665 = vmul.f32 %v562, %v653
        %v666 = vmul.f32 %v565, %v653
        %v667 = vmul.f32 %v570, %v653
        %v668 = vmul.f32 %v573, %v653
        %v669 = vmul.f32 %v578, %v653
        %v670 = vmul.f32 %v581, %v653
        %v671 = vmul.f32 %v586, %v653
        %v672 = vmul.f32 %v589, %v653
        %v673 = vmul.f32 %v594, %v653
        %v674 = vmul.f32 %v597, %v653
        %v675 = vmul.f32 %v602, %v653
        %v676 = vmul.f32 %v605, %v653
        %v677 = vmul.f32 %v610, %v653
        %v678 = vmul.f32 %v613, %v653
        %v679 = vmul.f32 %v618, %v653
        %v680 = vmul.f32 %v621, %v653
        %v681 = vmul.f32 %v626, %v653
        %v682 = vmul.f32 %v629, %v653
        %v683 = vmul.f32 %v634, %v653
        %v684 = vmul.f32 %v637, %v653
        %v685 = vmul.f32 %v642, %v653
        %v686 = vmul.f32 %v645, %v653
        %v687 = vld [vmem:[%s283] sm:$0x1]
        %v689 = vlaneseq
        %v690 = vshrl.u32 %v689, 7
        %v691 = vsub.s32 0, %v690
        %v692 = vrot.slane %v687, %v691
        %v694 = vadd.f32 %v655, %v692
        %v695 = vadd.f32 %v656, %v692
        %v696 = vadd.f32 %v657, %v692
        %v697 = vadd.f32 %v658, %v692
        %v698 = vadd.f32 %v659, %v692
        %v699 = vadd.f32 %v660, %v692
        %v700 = vadd.f32 %v661, %v692
        %v701 = vadd.f32 %v662, %v692
        %v702 = vadd.f32 %v663, %v692
        %v703 = vadd.f32 %v664, %v692
        %v704 = vadd.f32 %v665, %v692
        %v705 = vadd.f32 %v666, %v692
        %v706 = vadd.f32 %v667, %v692
        %v707 = vadd.f32 %v668, %v692
        %v708 = vadd.f32 %v669, %v692
        %v709 = vadd.f32 %v670, %v692
        %v710 = vadd.f32 %v671, %v692
        %v711 = vadd.f32 %v672, %v692
        %v712 = vadd.f32 %v673, %v692
        %v713 = vadd.f32 %v674, %v692
        %v714 = vadd.f32 %v675, %v692
        %v715 = vadd.f32 %v676, %v692
        %v716 = vadd.f32 %v677, %v692
        %v717 = vadd.f32 %v678, %v692
        %v718 = vadd.f32 %v679, %v692
        %v719 = vadd.f32 %v680, %v692
        %v720 = vadd.f32 %v681, %v692
        %v721 = vadd.f32 %v682, %v692
        %v722 = vadd.f32 %v683, %v692
        %v723 = vadd.f32 %v684, %v692
        %v724 = vadd.f32 %v685, %v692
        %v725 = vadd.f32 %v686, %v692
        %v726 = vmax.f32 %v694, 0.0
        %v727 = vmax.f32 %v695, 0.0
        %v728 = vmax.f32 %v696, 0.0
        %v729 = vmax.f32 %v697, 0.0
        %v730 = vmax.f32 %v698, 0.0
        %v731 = vmax.f32 %v699, 0.0
        %v732 = vmax.f32 %v700, 0.0
        %v733 = vmax.f32 %v701, 0.0
        %v734 = vmax.f32 %v702, 0.0
        %v735 = vmax.f32 %v703, 0.0
        %v736 = vmax.f32 %v704, 0.0
        %v737 = vmax.f32 %v705, 0.0
        %v738 = vmax.f32 %v706, 0.0
        %v739 = vmax.f32 %v707, 0.0
        %v740 = vmax.f32 %v708, 0.0
        %v741 = vmax.f32 %v709, 0.0
        %v742 = vmax.f32 %v710, 0.0
        %v743 = vmax.f32 %v711, 0.0
        %v744 = vmax.f32 %v712, 0.0
        %v745 = vmax.f32 %v713, 0.0
        %v746 = vmax.f32 %v714, 0.0
        %v747 = vmax.f32 %v715, 0.0
        %v748 = vmax.f32 %v716, 0.0
        %v749 = vmax.f32 %v717, 0.0
        %v750 = vmax.f32 %v718, 0.0
        %v751 = vmax.f32 %v719, 0.0
        %v752 = vmax.f32 %v720, 0.0
        %v753 = vmax.f32 %v721, 0.0
        %v754 = vmax.f32 %v722, 0.0
        %v755 = vmax.f32 %v723, 0.0
        %v756 = vmax.f32 %v724, 0.0
        %v757 = vmax.f32 %v725, 0.0
        %v758 = vpack.c.bf16 %v727, %v726
        %v759 = vpack.c.bf16 %v729, %v728
        %v760 = vpack.c.bf16 %v731, %v730
        %v761 = vpack.c.bf16 %v733, %v732
        %v762 = vpack.c.bf16 %v735, %v734
        %v763 = vpack.c.bf16 %v737, %v736
        %v764 = vpack.c.bf16 %v739, %v738
        %v765 = vpack.c.bf16 %v741, %v740
        %v766 = vpack.c.bf16 %v743, %v742
        %v767 = vpack.c.bf16 %v745, %v744
        %v768 = vpack.c.bf16 %v747, %v746
        %v769 = vpack.c.bf16 %v749, %v748
        %v770 = vpack.c.bf16 %v751, %v750
        %v771 = vpack.c.bf16 %v753, %v752
        %v772 = vpack.c.bf16 %v755, %v754
        %v773 = vpack.c.bf16 %v757, %v756
        %v790 = vunpack.c.l.b16 %v758
        %v791 = vunpack.c.h.b16 %v758
        %v792 = vunpack.c.l.b16 %v759
        %v793 = vunpack.c.h.b16 %v759
        %v794 = vunpack.c.l.b16 %v760
        %v795 = vunpack.c.h.b16 %v760
        %v796 = vunpack.c.l.b16 %v761
        %v797 = vunpack.c.h.b16 %v761
        %v798 = vunpack.c.l.b16 %v762
        %v799 = vunpack.c.h.b16 %v762
        %v800 = vunpack.c.l.b16 %v763
        %v801 = vunpack.c.h.b16 %v763
        %v802 = vunpack.c.l.b16 %v764
        %v803 = vunpack.c.h.b16 %v764
        %v804 = vunpack.c.l.b16 %v765
        %v805 = vunpack.c.h.b16 %v765
        %v806 = vunpack.c.l.b16 %v766
        %v807 = vunpack.c.h.b16 %v766
        %v808 = vunpack.c.l.b16 %v767
        %v809 = vunpack.c.h.b16 %v767
        %v810 = vunpack.c.l.b16 %v768
        %v811 = vunpack.c.h.b16 %v768
        %v812 = vunpack.c.l.b16 %v769
        %v813 = vunpack.c.h.b16 %v769
        %v814 = vunpack.c.l.b16 %v770
        %v815 = vunpack.c.h.b16 %v770
        %v816 = vunpack.c.l.b16 %v771
        %v817 = vunpack.c.h.b16 %v771
        %v818 = vunpack.c.l.b16 %v772
        %v819 = vunpack.c.h.b16 %v772
        %v820 = vunpack.c.l.b16 %v773
        %v821 = vunpack.c.h.b16 %v773
        %v822 = vpack.c.b16 %v790, %v790
        %v823 = vpack.c.b16 %v791, %v791
        %v824 = vpack.c.b16 %v792, %v792
        %v825 = vpack.c.b16 %v793, %v793
        %v826 = vpack.c.b16 %v794, %v794
        %v827 = vpack.c.b16 %v795, %v795
        %v828 = vpack.c.b16 %v796, %v796
        %v829 = vpack.c.b16 %v797, %v797
        %v830 = vpack.c.b16 %v798, %v798
        %v831 = vpack.c.b16 %v799, %v799
        %v832 = vpack.c.b16 %v800, %v800
        %v833 = vpack.c.b16 %v801, %v801
        %v834 = vpack.c.b16 %v802, %v802
        %v835 = vpack.c.b16 %v803, %v803
        %v836 = vpack.c.b16 %v804, %v804
        %v837 = vpack.c.b16 %v805, %v805
        %v838 = vpack.c.b16 %v806, %v806
        %v839 = vpack.c.b16 %v807, %v807
        %v840 = vpack.c.b16 %v808, %v808
        %v841 = vpack.c.b16 %v809, %v809
        %v842 = vpack.c.b16 %v810, %v810
        %v843 = vpack.c.b16 %v811, %v811
        %v844 = vpack.c.b16 %v812, %v812
        %v845 = vpack.c.b16 %v813, %v813
        %v846 = vpack.c.b16 %v814, %v814
        %v847 = vpack.c.b16 %v815, %v815
        %v848 = vpack.c.b16 %v816, %v816
        %v849 = vpack.c.b16 %v817, %v817
        %v850 = vpack.c.b16 %v818, %v818
        %v851 = vpack.c.b16 %v819, %v819
        %v852 = vpack.c.b16 %v820, %v820
        %v853 = vpack.c.b16 %v821, %v821
        %886 = vst [vmem:[%s276] sm:$0xf] %v822
        %887 = vst [vmem:[%s276 + $0x4] sm:$0xf] %v823
        %888 = vst [vmem:[%s276 + $0x8] sm:$0xf] %v824
        %889 = vst [vmem:[%s276 + $0xc] sm:$0xf] %v825
        %890 = vst [vmem:[%s276 + $0x10] sm:$0xf] %v826
        %891 = vst [vmem:[%s276 + $0x14] sm:$0xf] %v827
        %892 = vst [vmem:[%s276 + $0x18] sm:$0xf] %v828
        %893 = vst [vmem:[%s276 + $0x1c] sm:$0xf] %v829
        %894 = vst [vmem:[%s276 + $0x20] sm:$0xf] %v830
        %895 = vst [vmem:[%s276 + $0x24] sm:$0xf] %v831
        %896 = vst [vmem:[%s276 + $0x28] sm:$0xf] %v832
        %897 = vst [vmem:[%s276 + $0x2c] sm:$0xf] %v833
        %898 = vst [vmem:[%s276 + $0x30] sm:$0xf] %v834
        %899 = vst [vmem:[%s276 + $0x34] sm:$0xf] %v835
        %900 = vst [vmem:[%s276 + $0x38] sm:$0xf] %v836
        %901 = vst [vmem:[%s276 + $0x3c] sm:$0xf] %v837
        %902 = vst [vmem:[%s276 + $0x40] sm:$0xf] %v838
        %903 = vst [vmem:[%s276 + $0x44] sm:$0xf] %v839
        %904 = vst [vmem:[%s276 + $0x48] sm:$0xf] %v840
        %905 = vst [vmem:[%s276 + $0x4c] sm:$0xf] %v841
        %906 = vst [vmem:[%s276 + $0x50] sm:$0xf] %v842
        %907 = vst [vmem:[%s276 + $0x54] sm:$0xf] %v843
        %908 = vst [vmem:[%s276 + $0x58] sm:$0xf] %v844
        %909 = vst [vmem:[%s276 + $0x5c] sm:$0xf] %v845
        %910 = vst [vmem:[%s276 + $0x60] sm:$0xf] %v846
        %911 = vst [vmem:[%s276 + $0x64] sm:$0xf] %v847
        %912 = vst [vmem:[%s276 + $0x68] sm:$0xf] %v848
        %913 = vst [vmem:[%s276 + $0x6c] sm:$0xf] %v849
        %914 = vst [vmem:[%s276 + $0x70] sm:$0xf] %v850
        %915 = vst [vmem:[%s276 + $0x74] sm:$0xf] %v851
        %916 = vst [vmem:[%s276 + $0x78] sm:$0xf] %v852
        %917 = vst [vmem:[%s276 + $0x7c] sm:$0xf] %v853
        %s918 = sand.u32 %s152, 1
        %s919 = scalar_lea.sflag [#allocation4], %s918
        %s920 = sand.u32 %s152, 1
        %s921 = smul.addr %s920, 128
        %s922 = scalar_lea.vmem [#allocation7], %s921
        // Predicated region
        $region45: #{tpu_custom_call.1} parent=35 // pred_check
          %p923 = pneg %p162
        $region46: #{tpu_custom_call.1} parent=35 // pred_check_branch
          %925 = sbr.rel (%p923) target = $region48
        $region47: #{tpu_custom_call.1} parent=35 // pred_region
          %s926 = smul.u32 32, %s27
          %s928 = ssub.s32 2048, 2048
          %929 = vsyncadd %s919, %s928
          %s930 = sadd.s32 %s28, %s926
          %s931 = smul.addr %s930, 64
          %s932 = scalar_lea.hbm %s4, %s931
          %s933 = sshll.u32 %s922, 4
          %s934 = int_to_ptr.vmem [resolvable:$true] %s933
          %939 = dma.vmem_to_hbm [thread:$0]  %s934, 2048, %s932, %s919, 64, 64, 4
        $region48: #{tpu_custom_call.1} parent=35 // pred_fallthru
          _
      $region36: #{tpu_custom_call.1} parent=5 // pred_fallthru
        _
      %p940 = scmp.le.s32.totalorder 2, %s17
      // Predicated region
      $region49: #{tpu_custom_call.1} parent=5 // pred_check
        %p941 = pneg %p940
      $region50: #{tpu_custom_call.1} parent=5 // pred_check_branch
        %943 = sbr.rel (%p941) target = $region52
      $region51: #{tpu_custom_call.1} parent=5 // pred_region
        %s944 = ssub.s32 %s17, 2
        // Predicated region
        $region53: #{tpu_custom_call.1} parent=51 // pred_check
          %p945 = pneg %p168
        $region54: #{tpu_custom_call.1} parent=51 // pred_check_branch
          %947 = sbr.rel (%p945) target = $region56
        $region55: #{tpu_custom_call.1} parent=51 // pred_region
          %s948 = sand.u32 %s153, 1
          %s949 = scalar_lea.sflag [#allocation4], %s948
          %s950 = sand.u32 %s153, 1
          %s951 = smul.addr %s950, 128
          %s952 = scalar_lea.vmem [#allocation7], %s951
          %953 = dma.done %s949, 2048
        $region56: #{tpu_custom_call.1} parent=51 // pred_fallthru
          _
      $region52: #{tpu_custom_call.1} parent=5 // pred_fallthru
        _
    $region6: #{tpu_custom_call.1} parent=1 // loop_footer
      %s21 = sadd.s32 1, %s17
    $region7: #{tpu_custom_call.1} parent=1 // loop_footer_branch
      %16 = sbr.rel target = $region3
    $region8: #{tpu_custom_call.1} parent=1 // loop_exit
      _
    %954 = vsyncpa [#allocation3], 1
    %s955 = scalar_lea.sflag [#allocation3], 1
    %956 = vsyncpa %s955, 1
    %957 = vsyncpa [#allocation6], 1
    %958 = vsyncpa [#allocation4], 1
    %s959 = scalar_lea.sflag [#allocation4], 1
    %960 = vsyncpa %s959, 1

</llo_original>
